<compile_context>
chip_gen: v5e
topology: v5e:2x2
jax: 0.10.0
libtpu: 0.0.40
codegen_flags: <defaults>
</compile_context>

<pallas_src>
import math

import jax
import jax.numpy as jnp
from jax.experimental import pallas as pl
from jax.experimental.pallas import tpu as pltpu


NCORES = 2                       # leading "parallel" split (v7x 2nd TC); harmless on 1-TC chips
TARGET_BLOCK_BYTES = 1 << 20     # ~1 MiB per input block -> fits v5e's 16 MiB scoped VMEM


def _cdiv(a, b):
    return (a + b - 1) // b


def _lcm(a, b):
    return a * b // math.gcd(a, b)


# ----------------------------------------------------------------------------
# Kernel A: per-lane column sums of squared error (weighted + unweighted MSE)
# ----------------------------------------------------------------------------
def _se_colsum_kernel(x_ref, y_ref, acc_ref):
    # acc_ref: (1, 8, L) f32 accumulator slot for this core.
    @pl.when(pl.program_id(1) == 0)
    def _():
        acc_ref[...] = jnp.zeros_like(acc_ref)

    x = x_ref[...].astype(jnp.float32)          # (tile_g, 8, L)
    y = y_ref[...].astype(jnp.float32)
    d = x - y
    # Leading-axis sum = pure VPU adds; no XLU reduce in the steady-state loop.
    acc_ref[...] += (d * d).sum(axis=0, keepdims=True)


def se_column_sums(pred, targ, C):
    """Per-lane column sums of squared error.

    pred/targ: same shape, trailing axis C, any float dtype. Repacked
    lane-dense to (G, 8, L) with L = lcm(128, C) so lane l holds channel
    (l % C). Returns (colsum[L] f32, total_elements, L).
    """
    total = pred.size
    L = _lcm(128, C)
    row = 8 * L
    G = _cdiv(total, row)
    cap_g = max(1, TARGET_BLOCK_BYTES // (row * 4))
    tile_g = max(1, min(cap_g, _cdiv(G, NCORES)))
    inner = _cdiv(G, NCORES * tile_g)
    G_pad = NCORES * inner * tile_g
    flat_len = G_pad * row

    def prep(x):
        xf = x.reshape(-1)
        if flat_len > total:
            xf = jnp.pad(xf, (0, flat_len - total))   # zero pad -> contributes 0 to SE
        return xf.reshape(G_pad, 8, L)

    xp, yp = prep(pred), prep(targ)

    acc = pl.pallas_call(
        _se_colsum_kernel,
        out_shape=jax.ShapeDtypeStruct((NCORES, 8, L), jnp.float32),
        grid_spec=pltpu.PrefetchScalarGridSpec(
            num_scalar_prefetch=0,
            grid=(NCORES, inner),
            in_specs=[
                pl.BlockSpec((tile_g, 8, L), lambda c, i: (c * inner + i, 0, 0)),
                pl.BlockSpec((tile_g, 8, L), lambda c, i: (c * inner + i, 0, 0)),
            ],
            out_specs=pl.BlockSpec((1, 8, L), lambda c, i: (c, 0, 0)),
        ),
        compiler_params=pltpu.CompilerParams(
            dimension_semantics=("parallel", "arbitrary")),
    )(xp, yp)

    colsum = acc.sum(axis=(0, 1))                 # (L,)  -- tiny final reduce in JAX
    return colsum, total, L


# ----------------------------------------------------------------------------
# Kernel B: fused sweep for massmix variables:
#   * per-lane SE column sums (same as kernel A)
#   * per-(b,t) mass residual  1e-6 * sum((p - t) * a), squared & accumulated
# One HBM pass over pred/targ (+ airmass) instead of two.
# ----------------------------------------------------------------------------
def _fused_massmix_kernel(x_ref, y_ref, a_ref, acc_ref, mass_ref, macc_ref):
    b = pl.program_id(0)
    r = pl.program_id(1)

    @pl.when((b == 0) & (r == 0))
    def _():
        acc_ref[...] = jnp.zeros_like(acc_ref)
        mass_ref[0] = jnp.float32(0.0)

    @pl.when(r == 0)
    def _():
        macc_ref[...] = jnp.zeros_like(macc_ref)

    x = x_ref[...].astype(jnp.float32)            # (tile_g, 8, L)
    y = y_ref[...].astype(jnp.float32)
    a = a_ref[...].astype(jnp.float32)
    d = x - y
    acc_ref[...] += (d * d).sum(axis=0)           # (8, L) VPU adds
    macc_ref[...] += (d * a).sum(axis=0)          # (8, L) VPU adds

    @pl.when(r == pl.num_programs(1) - 1)
    def _():
        # One cross-lane reduce per (b, t), not per tile.
        md = jnp.sum(macc_ref[...]) * jnp.float32(1e-6)
        mass_ref[0] += md * md


def fused_massmix_sums(pred, targ, airmass, C):
    """pred/targ/airmass: (B, T, N, C), any float dtype.

    Returns (colsum[L] f32, mass_se_sum, total_elements, L) where
    mass_se_sum = sum_{b,t} (1e-6 * sum_{N,C}((p - t) * a))^2.
    """
    B, T, N, Cdim = pred.shape
    assert Cdim == C
    BT = B * T
    NC = N * C
    L = _lcm(128, C)
    row = 8 * L
    G_r = _cdiv(NC, row)
    cap_g = max(1, TARGET_BLOCK_BYTES // (row * 4))
    tile_g = max(1, min(cap_g, G_r))
    n_inner = _cdiv(G_r, tile_g)
    G_r_pad = n_inner * tile_g
    row_len_pad = G_r_pad * row

    def prep(x):
        x2 = x.reshape(BT, NC)
        if row_len_pad > NC:
            x2 = jnp.pad(x2, ((0, 0), (0, row_len_pad - NC)))   # zeros: 0 contribution
        return x2.reshape(BT * G_r_pad, 8, L)

    xp, yp, ap = prep(pred), prep(targ), prep(airmass)

    acc, mass_se = pl.pallas_call(
        _fused_massmix_kernel,
        out_shape=(jax.ShapeDtypeStruct((8, L), jnp.float32),
                   jax.ShapeDtypeStruct((1,), jnp.float32)),
        grid_spec=pltpu.PrefetchScalarGridSpec(
            num_scalar_prefetch=0,
            grid=(BT, n_inner),
            in_specs=[
                pl.BlockSpec((tile_g, 8, L), lambda b, r: (b * n_inner + r, 0, 0)),
                pl.BlockSpec((tile_g, 8, L), lambda b, r: (b * n_inner + r, 0, 0)),
                pl.BlockSpec((tile_g, 8, L), lambda b, r: (b * n_inner + r, 0, 0)),
            ],
            out_specs=(
                pl.BlockSpec((8, L), lambda b, r: (0, 0)),
                pl.BlockSpec((1,), lambda b, r: (0,), memory_space=pltpu.SMEM),
            ),
            scratch_shapes=[pltpu.VMEM((8, L), jnp.float32)],
        ),
        compiler_params=pltpu.CompilerParams(
            dimension_semantics=("arbitrary", "arbitrary")),
    )(xp, yp, ap)

    colsum = acc.sum(axis=0)                      # (L,)
    return colsum, mass_se[0], BT * NC, L


# ----------------------------------------------------------------------------
# Module wrapper (glue in plain JAX; all bulk reductions happen in Pallas)
# ----------------------------------------------------------------------------
class MSE:
    def __init__(self, weights=None, massconserve_weight=0.0,
                 spectral_power_weight=0.0, nlat=32, nlon=64, cutoff=None,
                 scale_by_spectral_power=True):
        weights = weights or {}
        self.vars = list(weights.keys())
        self.weights = {v: jnp.asarray(w, jnp.float32).reshape(-1)
                        for v, w in weights.items()}
        self.massconserve_weight = float(massconserve_weight)
        self.spectral_power_weight = float(spectral_power_weight)
        self.scale_by_spectral_power = scale_by_spectral_power
        # TODO(synk): spectral_power loss needs torch_harmonics.RealSHT (real
        # spherical-harmonic transform); no Pallas equivalent implemented here.

    def __call__(self, preds, batch):
        loss = jnp.float32(0.0)
        losses = {}
        for v in self.vars:
            p = preds[v]                      # keep native dtype (bf16 OK); kernel promotes
            t = batch[f"{v}_next"]
            C = p.shape[-1]
            w = self.weights[v]

            use_mass = ("massmix" in v) and self.massconserve_weight > 0
            if use_mass:
                a = batch["airmass_next"]
                colsum, mass_se_sum, total, L = fused_massmix_sums(p, t, a, C)
            else:
                colsum, total, L = se_column_sums(p, t, C)

            # lane l holds channel (l % C) -> tiled weight recovers weighted sum
            w_tiled = jnp.tile(w, L // C)
            denom = jnp.float32(total)
            mse = jnp.sum(colsum) / denom
            wmse = jnp.dot(colsum, w_tiled) / denom
            losses[f"Loss_Vari/weighted_{v}"] = wmse
            losses[f"Loss_Vari/unweighted_{v}"] = mse
            loss = loss + wmse

            if use_mass:
                B, T = p.shape[0], p.shape[1]
                mmse = mass_se_sum / jnp.float32(B * T)
                wmmse = mmse * self.massconserve_weight
                losses[f"Loss_Mass/unweighted_{v}"] = mmse
                losses[f"Loss_Mass/weighted_{v}"] = wmmse
                loss = loss + wmmse
        return loss, losses


# ----------------------------------------------------------------------------
# Pure-JAX reference (mirrors the PyTorch forward) for a correctness check
# ----------------------------------------------------------------------------
def reference_mse(weights, massconserve_weight, preds, batch):
    loss = jnp.float32(0.0)
    losses = {}
    for v in weights:
        p = preds[v].astype(jnp.float32)
        t = batch[f"{v}_next"].astype(jnp.float32)
        se = (p - t) ** 2
        w = weights[v].reshape(1, 1, 1, -1)
        wmse = jnp.mean(se * w)
        losses[f"Loss_Vari/weighted_{v}"] = wmse
        losses[f"Loss_Vari/unweighted_{v}"] = jnp.mean(se)
        loss = loss + wmse
        if "massmix" in v and massconserve_weight > 0:
            a = batch["airmass_next"].astype(jnp.float32)
            mp = (p / 1000000.0 * a).sum((-1, -2))
            mt = (t / 1000000.0 * a).sum((-1, -2))
            mmse = jnp.mean((mp - mt) ** 2)
            losses[f"Loss_Mass/unweighted_{v}"] = mmse
            losses[f"Loss_Mass/weighted_{v}"] = mmse * massconserve_weight
            loss = loss + mmse * massconserve_weight
    return loss, losses


if __name__ == "__main__":
    key = jax.random.PRNGKey(0)
    B, T, nlat, nlon, C = 2, 2, 8, 16, 8
    N = nlat * nlon  # 128

    weights = {
        "co2massmix": jnp.linspace(0.5, 2.0, C, dtype=jnp.float32),
        "airtemp": jnp.linspace(1.0, 3.0, C, dtype=jnp.float32),
    }

    k1, k2, k3, k4, k5 = jax.random.split(key, 5)
    preds = {
        "co2massmix": jax.random.normal(k1, (B, T, N, C), jnp.float32) + 400.0,
        "airtemp": jax.random.normal(k2, (B, T, N, C), jnp.float32),
    }
    batch = {
        "co2massmix_next": jax.random.normal(k3, (B, T, N, C), jnp.float32) + 400.0,
        "airtemp_next": jax.random.normal(k4, (B, T, N, C), jnp.float32),
        "airmass_next": jax.random.uniform(k5, (B, T, N, C), jnp.float32,
                                           minval=0.5, maxval=1.5),
    }

    loss_fn = MSE(weights=weights, massconserve_weight=1.0)
    loss, losses = loss_fn(preds, batch)
    loss = jax.block_until_ready(loss)
    for k in losses:
        jax.block_until_ready(losses[k])

    ref_loss, ref_losses = reference_mse(weights, 1.0, preds, batch)
    assert jnp.allclose(loss, ref_loss, rtol=1e-5, atol=1e-5), (loss, ref_loss)
    for k, vref in ref_losses.items():
        got = losses[k]
        if k.startswith("Loss_Mass"):
            # Reference form is cancellation-prone; kernel uses the better-
            # conditioned identity, so allow a looser relative tolerance here.
            assert jnp.allclose(got, vref, rtol=1e-2, atol=1e-10), (k, got, vref)
        else:
            assert jnp.allclose(got, vref, rtol=1e-5, atol=1e-6), (k, got, vref)

    print("KERNEL_OK")
</pallas_src>

<mosaic_0001>
module attributes {stable_mosaic.version = 11 : i64} {
  func.func @_fused_massmix_kernel(%arg0: i32, %arg1: i32, %arg2: memref<1x8x128xf32, #tpu.memory_space<vmem>>, %arg3: memref<1x8x128xf32, #tpu.memory_space<vmem>>, %arg4: memref<1x8x128xf32, #tpu.memory_space<vmem>>, %arg5: memref<8x128xf32, #tpu.memory_space<vmem>>, %arg6: memref<1xf32, #tpu.memory_space<smem>>, %arg7: memref<8x128xf32, #tpu.memory_space<vmem>>) attributes {dimension_semantics = [#tpu.dimension_semantics<arbitrary>, #tpu.dimension_semantics<arbitrary>], iteration_bounds = array<i64: 4, 1>, scalar_prefetch = 0 : i64, scratch_operands = 1 : i64, tpu.core_type = #tpu.core_type<tc>, window_params = [{transform_indices = @transform_0, window_bounds = array<i64: 1, 8, 128>}, {transform_indices = @transform_1, window_bounds = array<i64: 1, 8, 128>}, {transform_indices = @transform_2, window_bounds = array<i64: 1, 8, 128>}, {pipeline_mode = #tpu.pipeline_mode<synchronous>, transform_indices = @transform_3, window_bounds = array<i64: 8, 128>}, {transform_indices = @transform_4, window_bounds = array<i64: 1>}]} {
    %c0_i32 = arith.constant 0 : i32
    %0 = arith.cmpi eq, %arg0, %c0_i32 : i32
    %c0_i32_0 = arith.constant 0 : i32
    %1 = arith.cmpi eq, %arg1, %c0_i32_0 : i32
    %2 = arith.andi %0, %1 : i1
    %3 = arith.extui %2 : i1 to i32
    %c0_i32_1 = arith.constant 0 : i32
    %4 = arith.cmpi ne, %3, %c0_i32_1 : i32
    scf.if %4 {
      %cst_23 = arith.constant 0.000000e+00 : f32
      %25 = vector.broadcast %cst_23 : f32 to vector<8x128xf32>
      %c0_24 = arith.constant 0 : index
      %c0_25 = arith.constant 0 : index
      %26 = vector.load %arg5[%c0_24, %c0_25] : memref<8x128xf32, #tpu.memory_space<vmem>>, vector<8x128xf32>
      tpu.vector_store %arg5[%c0_24, %c0_25], %25 {strides = array<i32>} : memref<8x128xf32, #tpu.memory_space<vmem>>, vector<8x128xf32>,
      %cst_26 = arith.constant 0.000000e+00 : f32
      %c0_27 = arith.constant 0 : index
      %27 = memref.load %arg6[%c0_27] : memref<1xf32, #tpu.memory_space<smem>>
      memref.store %cst_26, %arg6[%c0_27] : memref<1xf32, #tpu.memory_space<smem>>
    } else {
    }
    %c0_i32_2 = arith.constant 0 : i32
    %5 = arith.cmpi eq, %arg1, %c0_i32_2 : i32
    %6 = arith.extui %5 : i1 to i32
    %c0_i32_3 = arith.constant 0 : i32
    %7 = arith.cmpi ne, %6, %c0_i32_3 : i32
    scf.if %7 {
      %cst_23 = arith.constant 0.000000e+00 : f32
      %25 = vector.broadcast %cst_23 : f32 to vector<8x128xf32>
      %c0_24 = arith.constant 0 : index
      %c0_25 = arith.constant 0 : index
      %26 = vector.load %arg7[%c0_24, %c0_25] : memref<8x128xf32, #tpu.memory_space<vmem>>, vector<8x128xf32>
      tpu.vector_store %arg7[%c0_24, %c0_25], %25 {strides = array<i32>} : memref<8x128xf32, #tpu.memory_space<vmem>>, vector<8x128xf32>,
    } else {
    }
    %c0 = arith.constant 0 : index
    %c0_4 = arith.constant 0 : index
    %c0_5 = arith.constant 0 : index
    %8 = vector.load %arg2[%c0, %c0_4, %c0_5] : memref<1x8x128xf32, #tpu.memory_space<vmem>>, vector<1x8x128xf32>
    %c0_6 = arith.constant 0 : index
    %c0_7 = arith.constant 0 : index
    %c0_8 = arith.constant 0 : index
    %9 = vector.load %arg3[%c0_6, %c0_7, %c0_8] : memref<1x8x128xf32, #tpu.memory_space<vmem>>, vector<1x8x128xf32>
    %c0_9 = arith.constant 0 : index
    %c0_10 = arith.constant 0 : index
    %c0_11 = arith.constant 0 : index
    %10 = vector.load %arg4[%c0_9, %c0_10, %c0_11] : memref<1x8x128xf32, #tpu.memory_space<vmem>>, vector<1x8x128xf32>
    %11 = arith.subf %8, %9 : vector<1x8x128xf32>
    %c0_12 = arith.constant 0 : index
    %c0_13 = arith.constant 0 : index
    %12 = vector.load %arg5[%c0_12, %c0_13] : memref<8x128xf32, #tpu.memory_space<vmem>>, vector<8x128xf32>
    %13 = arith.mulf %11, %11 : vector<1x8x128xf32>
    %cst = arith.constant dense<0.000000e+00> : vector<8x128xf32>
    %14 = vector.multi_reduction <add>, %13, %cst [0] : vector<1x8x128xf32> to vector<8x128xf32>
    %15 = arith.addf %12, %14 : vector<8x128xf32>
    %c0_14 = arith.constant 0 : index
    %c0_15 = arith.constant 0 : index
    %16 = vector.load %arg5[%c0_14, %c0_15] : memref<8x128xf32, #tpu.memory_space<vmem>>, vector<8x128xf32>
    tpu.vector_store %arg5[%c0_14, %c0_15], %15 {strides = array<i32>} : memref<8x128xf32, #tpu.memory_space<vmem>>, vector<8x128xf32>,
    %c0_16 = arith.constant 0 : index
    %c0_17 = arith.constant 0 : index
    %17 = vector.load %arg7[%c0_16, %c0_17] : memref<8x128xf32, #tpu.memory_space<vmem>>, vector<8x128xf32>
    %18 = arith.mulf %11, %10 : vector<1x8x128xf32>
    %cst_18 = arith.constant dense<0.000000e+00> : vector<8x128xf32>
    %19 = vector.multi_reduction <add>, %18, %cst_18 [0] : vector<1x8x128xf32> to vector<8x128xf32>
    %20 = arith.addf %17, %19 : vector<8x128xf32>
    %c0_19 = arith.constant 0 : index
    %c0_20 = arith.constant 0 : index
    %21 = vector.load %arg7[%c0_19, %c0_20] : memref<8x128xf32, #tpu.memory_space<vmem>>, vector<8x128xf32>
    tpu.vector_store %arg7[%c0_19, %c0_20], %20 {strides = array<i32>} : memref<8x128xf32, #tpu.memory_space<vmem>>, vector<8x128xf32>,
    %c0_i32_21 = arith.constant 0 : i32
    %22 = arith.cmpi eq, %arg1, %c0_i32_21 : i32
    %23 = arith.extui %22 : i1 to i32
    %c0_i32_22 = arith.constant 0 : i32
    %24 = arith.cmpi ne, %23, %c0_i32_22 : i32
    scf.if %24 {
      %c0_23 = arith.constant 0 : index
      %c0_24 = arith.constant 0 : index
      %25 = vector.load %arg7[%c0_23, %c0_24] : memref<8x128xf32, #tpu.memory_space<vmem>>, vector<8x128xf32>
      %26 = vector.shape_cast %25 : vector<8x128xf32> to vector<1x8x128xf32>
      %cst_25 = arith.constant dense<0.000000e+00> : vector<1xf32>
      %27 = vector.multi_reduction <add>, %26, %cst_25 [1, 2] : vector<1x8x128xf32> to vector<1xf32>
      %28 = vector.shape_cast %27 : vector<1xf32> to vector<1x1x1xf32>
      %29 = vector.extract %28[0, 0, 0] : f32 from vector<1x1x1xf32>
      %cst_26 = arith.constant 9.99999997E-7 : f32
      %30 = arith.mulf %29, %cst_26 : f32
      %c0_27 = arith.constant 0 : index
      %31 = memref.load %arg6[%c0_27] : memref<1xf32, #tpu.memory_space<smem>>
      %32 = arith.mulf %30, %30 : f32
      %33 = arith.addf %31, %32 : f32
      %c0_28 = arith.constant 0 : index
      %34 = memref.load %arg6[%c0_28] : memref<1xf32, #tpu.memory_space<smem>>
      memref.store %33, %arg6[%c0_28] : memref<1xf32, #tpu.memory_space<smem>>
    } else {
    }
    return
  }
  func.func @transform_0(%arg0: i32, %arg1: i32) -> (i32, i32, i32) {
    %c1_i32 = arith.constant 1 : i32
    %0 = arith.muli %arg0, %c1_i32 : i32
    %1 = arith.addi %0, %arg1 : i32
    %c0_i32 = arith.constant 0 : i32
    %c0_i32_0 = arith.constant 0 : i32
    %c0_i32_1 = arith.constant 0 : i32
    return %1, %c0_i32, %c0_i32_0 : i32, i32, i32
  }
  func.func @transform_1(%arg0: i32, %arg1: i32) -> (i32, i32, i32) {
    %c1_i32 = arith.constant 1 : i32
    %0 = arith.muli %arg0, %c1_i32 : i32
    %1 = arith.addi %0, %arg1 : i32
    %c0_i32 = arith.constant 0 : i32
    %c0_i32_0 = arith.constant 0 : i32
    %c0_i32_1 = arith.constant 0 : i32
    return %1, %c0_i32, %c0_i32_0 : i32, i32, i32
  }
  func.func @transform_2(%arg0: i32, %arg1: i32) -> (i32, i32, i32) {
    %c1_i32 = arith.constant 1 : i32
    %0 = arith.muli %arg0, %c1_i32 : i32
    %1 = arith.addi %0, %arg1 : i32
    %c0_i32 = arith.constant 0 : i32
    %c0_i32_0 = arith.constant 0 : i32
    %c0_i32_1 = arith.constant 0 : i32
    return %1, %c0_i32, %c0_i32_0 : i32, i32, i32
  }
  func.func @transform_3(%arg0: i32, %arg1: i32) -> (i32, i32) {
    %c0_i32 = arith.constant 0 : i32
    %c0_i32_0 = arith.constant 0 : i32
    %c0_i32_1 = arith.constant 0 : i32
    return %c0_i32, %c0_i32_0 : i32, i32
  }
  func.func @transform_4(%arg0: i32, %arg1: i32) -> i32 {
    %c0_i32 = arith.constant 0 : i32
    %c0_i32_0 = arith.constant 0 : i32
    return %c0_i32 : i32
  }
}

</mosaic_0001>

<llo_original>
// kernel: tpu_custom_call.1
$region0: #{tpu_custom_call.1}
  #allocation0 [shape = 'u32[]', space=smem, size = 0x4, offset = 0x4, fixed_abs, tag = 'smem constant byte address 0x4 - core index']
  #allocation1 [shape = 'u32[72,128]{1,0:T(1,128)}', space=vmem, size = 0x9000, scoped, tag = 'internal scratch']
  #allocation2 [shape = 'f32[8,128]{1,0:T(8,128)}', space=vmem, size = 0x1000, scoped, tag = 'scratch operand']
  %s0 = inlined_call_operand.hbm [shape: f32[4,8,128], index: 0, kind: input, shape index: {}]
  %s1 = inlined_call_operand.hbm [shape: f32[4,8,128], index: 1, kind: input, shape index: {}]
  %s2 = inlined_call_operand.hbm [shape: f32[4,8,128], index: 2, kind: input, shape index: {}]
  %s3 = inlined_call_operand.hbm [shape: f32[8,128], index: 3, kind: output, shape index: {0}]
  %s4 = inlined_call_operand.hbm [shape: f32[1], index: 4, kind: output, shape index: {1}]
  %5 = xla_tuple %s3, %s4
  %s6 = sld [smem:[#allocation0]]
  $region77: #{tpu_custom_call.1} parent=0
    _
  %s8 = ssub.s32 1, %s6
  %s9 = scalar_select 0, %s8, %s6
  $region1: #{tpu_custom_call.1} parent=0
    #allocation3 [shape = 'u8[8192]{0}', space=vmem, size = 0x2000, scoped, tag = 'input window, operand 0']
    #allocation4 [shape = 's32[2]{0}', space=sflag, size = 0x8, scoped, tag = 'scoped memory for tpu_custom_call.1']
    #allocation5 [shape = 's32[2]{0}', space=sflag, size = 0x8, scoped, tag = 'scoped memory for tpu_custom_call.1']
    #allocation6 [shape = 's32[2]{0}', space=sflag, size = 0x8, scoped, tag = 'scoped memory for tpu_custom_call.1']
    #allocation7 [shape = 'u8[8192]{0}', space=vmem, size = 0x2000, scoped, tag = 'input window, operand 1']
    #allocation8 [shape = 's32[2]{0}', space=sflag, size = 0x8, scoped, tag = 'scoped memory for tpu_custom_call.1']
    #allocation9 [shape = 'u8[8192]{0}', space=vmem, size = 0x2000, scoped, tag = 'input window, operand 2']
    #allocation10 [shape = 'u8[4096]{0}', space=vmem, size = 0x1000, scoped, tag = 'output window, operand 0, single buffered']
    #allocation11 [shape = 'u8[512]{0}', space=smem, size = 0x200, scoped, tag = 'output window, operand 1, single buffered']
    %10 = vsyncpa [#allocation4], 0
    %s11 = scalar_lea.sflag [#allocation4], 1
    %12 = vsyncpa %s11, 0
    %13 = vsyncpa [#allocation8], 0
    %s14 = scalar_lea.sflag [#allocation8], 1
    %15 = vsyncpa %s14, 0
    %16 = vsyncpa [#allocation5], 0
    %17 = vsyncpa [#allocation6], 0
    loop: start=0, step=1, limit=6
    $region2: #{tpu_custom_call.1} parent=1 // loop_pre_header
      _
    $region3: #{tpu_custom_call.1} parent=1 // loop_header
      %s19 = sphi 0, %s23
      %p20 = scmp.ge.s32.totalorder %s19, 6
      %s26 = sphi 0, %s38
      %s27 = sphi 0, %s34
      %s28 = sphi 0, %s26
      %s29 = sphi 0, %s27
      %s30 = sphi 0, %s28
      %s31 = sphi 0, %s29
      %s43 = sphi 0, %s45
      %s46 = sphi 0, %s43
      %s47 = sphi 0, %s46
      %s63 = sphi 0, %s47
      %s71 = sphi 0, %s73
      %s74 = sphi 0, %s71
      %s75 = sphi 0, %s74
      %s91 = sphi 0, %s75
      %s99 = sphi 0, %s101
      %s102 = sphi 0, %s99
      %s103 = sphi 0, %s102
      %s119 = sphi 0, %s103
      %s123 = sphi 0, %s123
      %s125 = sphi 0, %s123
      %s126 = sphi 0, %s125
      %s140 = sphi 0, %s126
      %s144 = sphi 0, %s144
      %s146 = sphi 0, %s144
      %s147 = sphi 0, %s146
      %s161 = sphi 0, %s147
    $region4: #{tpu_custom_call.1} parent=1 // loop_header_branch
      %22 = sbr.rel (%p20) target = $region8
    $region5: #{tpu_custom_call.1} parent=1 // loop_body
      %s24 = ssub.s32 %s19, 1
      %s25 = ssub.s32 %s19, 2
      %s32 = sadd.s32 1, %s27
      %p33 = scmp.ge.s32.totalorder %s32, 1
      %s34 = scalar_select %p33, 0, %s32
      %s35 = sadd.s32 1, %s26
      %s36 = scalar_select %p33, %s35, %s26
      %p37 = scmp.ge.s32.totalorder %s36, 4
      %s38 = scalar_select %p37, 0, %s36
      %s39 = sadd.s32 %s26, %s27
      %s40 = sadd.s32 %s38, %s34
      %s41 = ssub.s32 %s39, %s40
      %p42 = scmp.eq.s32.totalorder %s41, 0
      %s44 = sadd.s32 %s43, 1
      %s45 = scalar_select %p42, %s43, %s44
      %p48 = pneg %p42
      %p49 = scmp.eq.s32.totalorder %s19, 3
      %p50 = por %p48, %p49
      %p51 = scmp.ne.s32.totalorder %s43, %s46
      %p52 = scmp.eq.s32.totalorder %s19, 0
      %p53 = por %p51, %p52
      %p54 = scmp.ne.s32.totalorder %s43, %s46
      %p55 = scmp.eq.s32.totalorder %s24, 3
      %p56 = por %p54, %p55
      %p57 = scmp.ne.s32.totalorder %s46, %s47
      %p58 = scmp.eq.s32.totalorder %s24, 0
      %p59 = por %p57, %p58
      %p60 = scmp.ne.s32.totalorder %s46, %s47
      %p61 = scmp.eq.s32.totalorder %s25, 3
      %p62 = por %p60, %p61
      %p64 = scmp.ne.s32.totalorder %s47, %s63
      %p65 = scmp.eq.s32.totalorder %s25, 0
      %p66 = por %p64, %p65
      %s67 = sadd.s32 %s26, %s27
      %s68 = sadd.s32 %s38, %s34
      %s69 = ssub.s32 %s67, %s68
      %p70 = scmp.eq.s32.totalorder %s69, 0
      %s72 = sadd.s32 %s71, 1
      %s73 = scalar_select %p70, %s71, %s72
      %p76 = pneg %p70
      %p77 = scmp.eq.s32.totalorder %s19, 3
      %p78 = por %p76, %p77
      %p79 = scmp.ne.s32.totalorder %s71, %s74
      %p80 = scmp.eq.s32.totalorder %s19, 0
      %p81 = por %p79, %p80
      %p82 = scmp.ne.s32.totalorder %s71, %s74
      %p83 = scmp.eq.s32.totalorder %s24, 3
      %p84 = por %p82, %p83
      %p85 = scmp.ne.s32.totalorder %s74, %s75
      %p86 = scmp.eq.s32.totalorder %s24, 0
      %p87 = por %p85, %p86
      %p88 = scmp.ne.s32.totalorder %s74, %s75
      %p89 = scmp.eq.s32.totalorder %s25, 3
      %p90 = por %p88, %p89
      %p92 = scmp.ne.s32.totalorder %s75, %s91
      %p93 = scmp.eq.s32.totalorder %s25, 0
      %p94 = por %p92, %p93
      %s95 = sadd.s32 %s26, %s27
      %s96 = sadd.s32 %s38, %s34
      %s97 = ssub.s32 %s95, %s96
      %p98 = scmp.eq.s32.totalorder %s97, 0
      %s100 = sadd.s32 %s99, 1
      %s101 = scalar_select %p98, %s99, %s100
      %p104 = pneg %p98
      %p105 = scmp.eq.s32.totalorder %s19, 3
      %p106 = por %p104, %p105
      %p107 = scmp.ne.s32.totalorder %s99, %s102
      %p108 = scmp.eq.s32.totalorder %s19, 0
      %p109 = por %p107, %p108
      %p110 = scmp.ne.s32.totalorder %s99, %s102
      %p111 = scmp.eq.s32.totalorder %s24, 3
      %p112 = por %p110, %p111
      %p113 = scmp.ne.s32.totalorder %s102, %s103
      %p114 = scmp.eq.s32.totalorder %s24, 0
      %p115 = por %p113, %p114
      %p116 = scmp.ne.s32.totalorder %s102, %s103
      %p117 = scmp.eq.s32.totalorder %s25, 3
      %p118 = por %p116, %p117
      %p120 = scmp.ne.s32.totalorder %s103, %s119
      %p121 = scmp.eq.s32.totalorder %s25, 0
      %p122 = por %p120, %p121
      %s124 = sadd.s32 %s123, 1
      %p127 = scmp.eq.s32.totalorder %s19, 3
      %p128 = scmp.ne.s32.totalorder %s123, %s125
      %p129 = scmp.eq.s32.totalorder %s19, 0
      %p130 = por %p128, %p129
      %p131 = scmp.ne.s32.totalorder %s123, %s125
      %p132 = scmp.eq.s32.totalorder %s24, 3
      %p133 = por %p131, %p132
      %p134 = scmp.ne.s32.totalorder %s125, %s126
      %p135 = scmp.eq.s32.totalorder %s24, 0
      %p136 = por %p134, %p135
      %p137 = scmp.ne.s32.totalorder %s125, %s126
      %p138 = scmp.eq.s32.totalorder %s25, 3
      %p139 = por %p137, %p138
      %p141 = scmp.ne.s32.totalorder %s126, %s140
      %p142 = scmp.eq.s32.totalorder %s25, 0
      %p143 = por %p141, %p142
      %s145 = sadd.s32 %s144, 1
      %p148 = scmp.eq.s32.totalorder %s19, 3
      %p149 = scmp.ne.s32.totalorder %s144, %s146
      %p150 = scmp.eq.s32.totalorder %s19, 0
      %p151 = por %p149, %p150
      %p152 = scmp.ne.s32.totalorder %s144, %s146
      %p153 = scmp.eq.s32.totalorder %s24, 3
      %p154 = por %p152, %p153
      %p155 = scmp.ne.s32.totalorder %s146, %s147
      %p156 = scmp.eq.s32.totalorder %s24, 0
      %p157 = por %p155, %p156
      %p158 = scmp.ne.s32.totalorder %s146, %s147
      %p159 = scmp.eq.s32.totalorder %s25, 3
      %p160 = por %p158, %p159
      %p162 = scmp.ne.s32.totalorder %s147, %s161
      %p163 = scmp.eq.s32.totalorder %s25, 0
      %p164 = por %p162, %p163
      %p165 = scmp.le.s32.totalorder 1, %s19
      %p166 = scmp.lt.s32.totalorder %s19, 5
      %p167 = pnand %p165, %p166
      %p168 = pneg %p167
      // Predicated region
      $region9: #{tpu_custom_call.1} parent=5 // pred_check
        _
      $region10: #{tpu_custom_call.1} parent=5 // pred_check_branch
        %170 = sbr.rel (%p167) target = $region12
      $region11: #{tpu_custom_call.1} parent=5 // pred_region
        %s171 = ssub.s32 %s19, 1
      $region12: #{tpu_custom_call.1} parent=5 // pred_fallthru
        _
      %p172 = scmp.lt.s32.totalorder %s19, 4
      // Predicated region
      $region13: #{tpu_custom_call.1} parent=5 // pred_check
        %p173 = pneg %p172
      $region14: #{tpu_custom_call.1} parent=5 // pred_check_branch
        %175 = sbr.rel (%p173) target = $region16
      $region15: #{tpu_custom_call.1} parent=5 // pred_region
        // Predicated region
        $region17: #{tpu_custom_call.1} parent=15 // pred_check
          %p176 = pneg %p53
        $region18: #{tpu_custom_call.1} parent=15 // pred_check_branch
          %178 = sbr.rel (%p176) target = $region20
        $region19: #{tpu_custom_call.1} parent=15 // pred_region
          %s179 = sand.u32 %s43, 1
          %s180 = scalar_lea.sflag [#allocation4], %s179
          %s181 = sand.u32 %s43, 1
          %s182 = smul.addr %s181, 8
          %s183 = scalar_lea.vmem [#allocation3], %s182
          %s184 = sadd.s32 %s26, %s27
          %186 = vsyncadd %s180, 0
          %s187 = smul.addr %s184, 8
          %s188 = scalar_lea.hbm %s0, %s187
          %s190 = sshll.u32 %s188, 4
          %s191 = int_to_ptr.hbm [resolvable:$true] %s190
          %s192 = sshll.u32 %s183, 4
          %s193 = int_to_ptr.vmem [resolvable:$true] %s192
          %195 = dma.hbm_to_vmem [thread:$0]  %s191, 128, %s193, %s180
        $region20: #{tpu_custom_call.1} parent=15 // pred_fallthru
          _
        // Predicated region
        $region21: #{tpu_custom_call.1} parent=15 // pred_check
          %p196 = pneg %p81
        $region22: #{tpu_custom_call.1} parent=15 // pred_check_branch
          %198 = sbr.rel (%p196) target = $region24
        $region23: #{tpu_custom_call.1} parent=15 // pred_region
          %s199 = sand.u32 %s19, 1
          %s200 = scalar_lea.sflag [#allocation8], %s199
          %s201 = sand.u32 %s71, 1
          %s202 = smul.addr %s201, 8
          %s203 = scalar_lea.vmem [#allocation7], %s202
          %s204 = sadd.s32 %s26, %s27
          %206 = vsyncadd %s200, 0
          %s207 = smul.addr %s204, 8
          %s208 = scalar_lea.hbm %s1, %s207
          %s210 = sshll.u32 %s208, 4
          %s211 = int_to_ptr.hbm [resolvable:$true] %s210
          %s212 = sshll.u32 %s203, 4
          %s213 = int_to_ptr.vmem [resolvable:$true] %s212
          %215 = dma.hbm_to_vmem [thread:$0]  %s211, 128, %s213, %s200
        $region24: #{tpu_custom_call.1} parent=15 // pred_fallthru
          _
        // Predicated region
        $region25: #{tpu_custom_call.1} parent=15 // pred_check
          %p216 = pneg %p109
        $region26: #{tpu_custom_call.1} parent=15 // pred_check_branch
          %218 = sbr.rel (%p216) target = $region28
        $region27: #{tpu_custom_call.1} parent=15 // pred_region
          %s219 = sand.u32 %s19, 1
          %s220 = scalar_lea.sflag [#allocation8], %s219
          %s221 = sand.u32 %s99, 1
          %s222 = smul.addr %s221, 8
          %s223 = scalar_lea.vmem [#allocation9], %s222
          %s224 = sadd.s32 %s26, %s27
          %226 = vsyncadd %s220, 0
          %s227 = smul.addr %s224, 8
          %s228 = scalar_lea.hbm %s2, %s227
          %s230 = sshll.u32 %s228, 4
          %s231 = int_to_ptr.hbm [resolvable:$true] %s230
          %s232 = sshll.u32 %s223, 4
          %s233 = int_to_ptr.vmem [resolvable:$true] %s232
          %235 = dma.hbm_to_vmem [thread:$0]  %s231, 128, %s233, %s220
        $region28: #{tpu_custom_call.1} parent=15 // pred_fallthru
          _
      $region16: #{tpu_custom_call.1} parent=5 // pred_fallthru
        _
      %p236 = scmp.le.s32.totalorder 1, %s19
      %p237 = scmp.lt.s32.totalorder %s19, 5
      %p238 = pnand %p236, %p237
      %p239 = pneg %p238
      // Predicated region
      $region29: #{tpu_custom_call.1} parent=5 // pred_check
        _
      $region30: #{tpu_custom_call.1} parent=5 // pred_check_branch
        %241 = sbr.rel (%p238) target = $region32
      $region31: #{tpu_custom_call.1} parent=5 // pred_region
        %s242 = ssub.s32 %s19, 1
        %s243 = sand.u32 %s46, 1
        %s244 = scalar_lea.sflag [#allocation4], %s243
        %s245 = sand.u32 %s46, 1
        %s246 = smul.addr %s245, 8
        %s247 = scalar_lea.vmem [#allocation3], %s246
        // Predicated region
        $region33: #{tpu_custom_call.1} parent=31 // pred_check
          %p248 = pneg %p59
        $region34: #{tpu_custom_call.1} parent=31 // pred_check_branch
          %250 = sbr.rel (%p248) target = $region36
        $region35: #{tpu_custom_call.1} parent=31 // pred_region
          %252 = dma.done %s244, 128
        $region36: #{tpu_custom_call.1} parent=31 // pred_fallthru
          _
        %s253 = sand.u32 %s24, 1
        %s254 = scalar_lea.sflag [#allocation8], %s253
        %s255 = sand.u32 %s74, 1
        %s256 = smul.addr %s255, 8
        %s257 = scalar_lea.vmem [#allocation7], %s256
        // Predicated region
        $region37: #{tpu_custom_call.1} parent=31 // pred_check
          %p258 = pneg %p87
        $region38: #{tpu_custom_call.1} parent=31 // pred_check_branch
          %260 = sbr.rel (%p258) target = $region40
        $region39: #{tpu_custom_call.1} parent=31 // pred_region
          %262 = dma.done %s254, 128
        $region40: #{tpu_custom_call.1} parent=31 // pred_fallthru
          _
        %s263 = sand.u32 %s24, 1
        %s264 = scalar_lea.sflag [#allocation8], %s263
        %s265 = sand.u32 %s102, 1
        %s266 = smul.addr %s265, 8
        %s267 = scalar_lea.vmem [#allocation9], %s266
        // Predicated region
        $region41: #{tpu_custom_call.1} parent=31 // pred_check
          %p268 = pneg %p115
        $region42: #{tpu_custom_call.1} parent=31 // pred_check_branch
          %270 = sbr.rel (%p268) target = $region44
        $region43: #{tpu_custom_call.1} parent=31 // pred_region
          %272 = dma.done %s264, 128
        $region44: #{tpu_custom_call.1} parent=31 // pred_fallthru
          _
        %s273 = sand.u32 %s46, 1
        %s274 = scalar_lea.sflag [#allocation4], %s273
        %s275 = sand.u32 %s46, 1
        %s276 = smul.addr %s275, 8
        %s277 = scalar_lea.vmem [#allocation3], %s276
        %p278 = pneg %p59
        %p279 = pneg %p56
        %s280 = sand.u32 %s24, 1
        %s281 = scalar_lea.sflag [#allocation8], %s280
        %s282 = sand.u32 %s74, 1
        %s283 = smul.addr %s282, 8
        %s284 = scalar_lea.vmem [#allocation7], %s283
        %p285 = pneg %p87
        %p286 = pneg %p84
        %s287 = sand.u32 %s24, 1
        %s288 = scalar_lea.sflag [#allocation8], %s287
        %s289 = sand.u32 %s102, 1
        %s290 = smul.addr %s289, 8
        %s291 = scalar_lea.vmem [#allocation9], %s290
        %p292 = pneg %p115
        %p293 = pneg %p112
        %p294 = pneg %p136
        %p295 = pneg %p133
        %p296 = pneg %p157
        %p297 = pneg %p154
        %s298 = sadd.s32 %s28, %s29
        %s299 = sadd.s32 %s28, %s29
        %s300 = sadd.s32 %s28, %s29
        %p301 = scmp.eq.s32.totalorder %s28, 0
        %p302 = scmp.eq.s32.totalorder %s29, 0
        %p303 = pnand %p301, %p302
        %p304 = pneg %p303
        // Predicated region
        $region45: #{tpu_custom_call.1} parent=31 // pred_check
          _
        $region46: #{tpu_custom_call.1} parent=31 // pred_check_branch
          %306 = sbr.rel (%p303) target = $region48
        $region47: #{tpu_custom_call.1} parent=31 // pred_region
          %307 = vst [vmem:[#allocation10] sm:$0xff] 0.0
          %s308 = scalar_lea.smem [#allocation11], 0
          %309 = sst [smem:[%s308]] 0.0
        $region48: #{tpu_custom_call.1} parent=31 // pred_fallthru
          _
        // Predicated region
        $region49: #{tpu_custom_call.1} parent=31 // pred_check
          %p310 = pneg %p302
        $region50: #{tpu_custom_call.1} parent=31 // pred_check_branch
          %312 = sbr.rel (%p310) target = $region52
        $region51: #{tpu_custom_call.1} parent=31 // pred_region
          %313 = vst [vmem:[#allocation2] sm:$0xff] 0.0
        $region52: #{tpu_custom_call.1} parent=31 // pred_fallthru
          _
        %v314 = vld [vmem:[%s247] sm:$0xff]
        %v315 = vld [vmem:[%s257] sm:$0xff]
        %v316 = vld [vmem:[%s267] sm:$0xff]
        %v317 = vsub.f32 %v314, %v315
        %v318 = vld [vmem:[#allocation10] sm:$0xff]
        %v319 = vmul.f32 %v317, %v317
        %v320 = vadd.f32 %v319, 0.0
        %v321 = vadd.f32 %v318, %v320
        %322 = vst [vmem:[#allocation10] sm:$0xff] %v321
        %v323 = vld [vmem:[#allocation2] sm:$0xff]
        %v324 = vmul.f32 %v317, %v316
        %v325 = vadd.f32 %v324, 0.0
        %v326 = vadd.f32 %v323, %v325
        %327 = vst [vmem:[#allocation2] sm:$0xff] %v326
        // Predicated region
        $region53: #{tpu_custom_call.1} parent=31 // pred_check
          %p328 = pneg %p302
        $region54: #{tpu_custom_call.1} parent=31 // pred_check_branch
          %330 = sbr.rel (%p328) target = $region56
        $region55: #{tpu_custom_call.1} parent=31 // pred_region
          %v331 = vld [vmem:[#allocation2] sm:$0xff]
          %332 = vadd.xlane.f32.xlu0 %v331
          %v333 = vpop.xlane.xlu0 %332
          %v334 = vrot.slane %v333, 4
          %v335 = vadd.f32 %v333, %v334
          %v336 = vrot.slane %v335, 2
          %v337 = vadd.f32 %v335, %v336
          %v338 = vrot.slane %v337, 1
          %v339 = vadd.f32 %v337, %v338
          %s340 = vtos %v339
          %s341 = smul.f32 %s340, 1e-06
          %s342 = sld [smem:[#allocation11]]
          %s343 = smul.f32 %s341, %s341
          %s344 = sadd.f32 %s342, %s343
          %s345 = scalar_lea.smem [#allocation11], 0
          %346 = sst [smem:[%s345]] %s344
        $region56: #{tpu_custom_call.1} parent=31 // pred_fallthru
          _
        // Predicated region
        $region57: #{tpu_custom_call.1} parent=31 // pred_check
          %p347 = pneg %p133
        $region58: #{tpu_custom_call.1} parent=31 // pred_check_branch
          %349 = sbr.rel (%p347) target = $region60
        $region59: #{tpu_custom_call.1} parent=31 // pred_region
          %351 = vsyncadd [#allocation5], 0
          %s353 = sshll.u32 [#allocation10], 4
          %s354 = int_to_ptr.vmem [resolvable:$true] %s353
          %s355 = sshll.u32 %s3, 4
          %s356 = int_to_ptr.hbm [resolvable:$true] %s355
          %358 = dma.vmem_to_hbm [thread:$0]  %s354, 128, %s356, [#allocation5]
        $region60: #{tpu_custom_call.1} parent=31 // pred_fallthru
          _
        // Predicated region
        $region61: #{tpu_custom_call.1} parent=31 // pred_check
          %p359 = pneg %p154
        $region62: #{tpu_custom_call.1} parent=31 // pred_check_branch
          %361 = sbr.rel (%p359) target = $region64
        $region63: #{tpu_custom_call.1} parent=31 // pred_region
          %363 = vsyncadd [#allocation6], 0
          %s365 = sshll.u32 %s4, 4
          %s366 = int_to_ptr.hbm [resolvable:$true] %s365
          %368 = dma.smem_to_hbm [#allocation11], 16, %s366, [#allocation6]
        $region64: #{tpu_custom_call.1} parent=31 // pred_fallthru
          _
        // Predicated region
        $region65: #{tpu_custom_call.1} parent=31 // pred_check
          %p369 = pneg %p133
        $region66: #{tpu_custom_call.1} parent=31 // pred_check_branch
          %371 = sbr.rel (%p369) target = $region68
        $region67: #{tpu_custom_call.1} parent=31 // pred_region
          %373 = dma.done [#allocation5], 128
        $region68: #{tpu_custom_call.1} parent=31 // pred_fallthru
          _
        // Predicated region
        $region69: #{tpu_custom_call.1} parent=31 // pred_check
          %p374 = pneg %p154
        $region70: #{tpu_custom_call.1} parent=31 // pred_check_branch
          %376 = sbr.rel (%p374) target = $region72
        $region71: #{tpu_custom_call.1} parent=31 // pred_region
          %378 = dma.done [#allocation6], 16
        $region72: #{tpu_custom_call.1} parent=31 // pred_fallthru
          _
        %379 = sfence
      $region32: #{tpu_custom_call.1} parent=5 // pred_fallthru
        _
      %p380 = scmp.le.s32.totalorder 2, %s19
      // Predicated region
      $region73: #{tpu_custom_call.1} parent=5 // pred_check
        %p381 = pneg %p380
      $region74: #{tpu_custom_call.1} parent=5 // pred_check_branch
        %383 = sbr.rel (%p381) target = $region76
      $region75: #{tpu_custom_call.1} parent=5 // pred_region
        %s384 = ssub.s32 %s19, 2
      $region76: #{tpu_custom_call.1} parent=5 // pred_fallthru
        _
    $region6: #{tpu_custom_call.1} parent=1 // loop_footer
      %s23 = sadd.s32 1, %s19
    $region7: #{tpu_custom_call.1} parent=1 // loop_footer_branch
      %18 = sbr.rel target = $region3
    $region8: #{tpu_custom_call.1} parent=1 // loop_exit
      _
    %385 = vsyncpa [#allocation4], 1
    %s386 = scalar_lea.sflag [#allocation4], 1
    %387 = vsyncpa %s386, 1
    %388 = vsyncpa [#allocation8], 1
    %s389 = scalar_lea.sflag [#allocation8], 1
    %390 = vsyncpa %s389, 1
    %391 = vsyncpa [#allocation5], 1
    %s392 = scalar_lea.sflag [#allocation5], 1
    %393 = vsyncpa %s392, 1
    %394 = vsyncpa [#allocation6], 1
    %s395 = scalar_lea.sflag [#allocation6], 1
    %396 = vsyncpa %s395, 1

</llo_original>
